<compile_context>
chip_gen: v7x
topology: tpu7x:2x2x1
jax: 0.10.0
libtpu: 0.0.40
codegen_flags: <defaults>
</compile_context>

<pallas_src>
import functools

import jax
import jax.numpy as jnp
from jax.experimental import pallas as pl
from jax.experimental.pallas import tpu as pltpu


_VMEM_LIMIT = 32 * 1024 * 1024   # explicit, safe on v5e/v6e/v7x


# ----------------------------------------------------------------------------
# Tiling helpers: prefer exact divisors; pad only when factorisation is awkward
# ----------------------------------------------------------------------------
def _round_up(x, m):
    return -(-x // m) * m


def _backbone_tiling(num_pixels, cap_px, floor_px=8192):
    """Return (tile_px, padded_px). tile_px divides padded_px, multiple of 128."""
    cap_px = max(128, (cap_px // 128) * 128)
    base = _round_up(num_pixels, 128)
    if base <= cap_px:
        return base, base
    units, cap_u = base // 128, cap_px // 128
    best = 1
    for d in range(cap_u, 0, -1):
        if units % d == 0:
            best = d
            break
    if best * 128 >= floor_px:
        return best * 128, base            # exact divisor, no extra padding
    # Awkward factorisation: pad up to a multiple of the capped tile instead of
    # falling off the per-step-overhead cliff with tiny tiles.
    return cap_px, _round_up(base, cap_px)


def _curve_tiling(num_pixels, cap_rows, floor_rows=256):
    """Return (tile_rows, padded_rows). One row = 128 pixels."""
    rows = _round_up(num_pixels, 128) // 128
    cap_rows = max(8, (cap_rows // 8) * 8)
    if rows <= cap_rows:
        return rows, rows                  # single full-extent block per channel
    best = 0
    for d in range(cap_rows, 7, -1):
        if rows % d == 0 and d % 8 == 0:
            best = d
            break
    if best >= floor_rows:
        return best, rows                  # exact divisor, no extra padding
    return cap_rows, _round_up(rows, cap_rows)


# ----------------------------------------------------------------------------
# Kernel 1: backbone stand-in (pointwise conv stack) fused with global avg pool
#   grid = (B, pixel chunks), both "parallel" (megacore-friendly even at B == 1).
#   Each step writes a per-chunk partial pixel sum; XLA finishes mean over chunks.
# ----------------------------------------------------------------------------
# TODO(synk): TransformerUnet internals are not provided in the reference; a
# deterministic 2-layer pointwise-conv encoder (3 -> features -> knot_channels,
# ReLU) is used as the backbone hot-path stand-in.
def backbone_pool_kernel(x_ref, w1_ref, b1_ref, w2_ref, b2_ref, part_ref,
                         *, tile_p, num_valid, mask_tail):
    x = x_ref[0].astype(jnp.float32)                     # (3, tile_p), pixels on lanes
    w1 = w1_ref[...]                                     # (F, 3), f32

    # Layer 1 (3 -> F): K=3 would waste the MXU, so do 3 broadcast FMAs on the VPU.
    h = (w1[:, 0:1] * x[0:1, :]
         + w1[:, 1:2] * x[1:2, :]
         + w1[:, 2:3] * x[2:3, :]
         + b1_ref[...])
    h = jnp.maximum(h, 0.0)                              # (F, tile_p)

    # Layer 2 (F -> C) on the MXU, native bf16 operands, f32 accumulation.
    f = jnp.dot(w2_ref[...], h.astype(jnp.bfloat16),
                preferred_element_type=jnp.float32) + b2_ref[...]
    f = jnp.maximum(f, 0.0)                              # (C, tile_p)

    if mask_tail:
        # Zero contribution of zero-padded pixels (bias paths are non-zero).
        lane = jax.lax.broadcasted_iota(jnp.int32, (1, tile_p), 1)
        valid = (pl.program_id(1) * tile_p + lane) < num_valid
        f = jnp.where(valid, f, 0.0)

    part_ref[0, 0] = jnp.sum(f, axis=1, keepdims=True)   # (C, 1) per-chunk pixel sum


def backbone_pool(x_chan, params, *, tile_p, num_valid):
    B, _, P_pad = x_chan.shape
    F = params["w1"].shape[0]
    C = params["w2"].shape[0]
    nchunks = P_pad // tile_p
    kernel = functools.partial(backbone_pool_kernel, tile_p=tile_p,
                               num_valid=num_valid, mask_tail=(P_pad != num_valid))
    w2_bf16 = params["w2"].astype(jnp.bfloat16)          # pre-cast once for the MXU
    parts = pl.pallas_call(
        kernel,
        out_shape=jax.ShapeDtypeStruct((B, nchunks, C, 1), jnp.float32),
        grid_spec=pltpu.PrefetchScalarGridSpec(
            num_scalar_prefetch=0,
            grid=(B, nchunks),
            in_specs=[
                pl.BlockSpec((1, 3, tile_p), lambda b, p: (b, 0, p)),
                pl.BlockSpec((F, 3), lambda b, p: (0, 0)),
                pl.BlockSpec((F, 1), lambda b, p: (0, 0)),
                pl.BlockSpec((C, F), lambda b, p: (0, 0)),
                pl.BlockSpec((C, 1), lambda b, p: (0, 0)),
            ],
            out_specs=pl.BlockSpec((1, 1, C, 1), lambda b, p: (b, p, 0, 0)),
        ),
        compiler_params=pltpu.CompilerParams(
            dimension_semantics=("parallel", "parallel"),
            vmem_limit_bytes=_VMEM_LIMIT),
    )(x_chan, params["w1"], params["b1"], w2_bf16, params["b2"])
    # Finish AdaptiveAvgPool2d(1): tiny reduction over chunks, mean over TRUE pixels.
    return jnp.sum(parts[..., 0], axis=1) * (1.0 / num_valid)     # (B, C)


# ----------------------------------------------------------------------------
# Kernel 2: CURL piecewise-linear RGB curve application (CureApply.adjust_rgb)
#   grid = (B*3, row tiles); each tile is a lane/sublane-dense (rows, 128) slab of
#   one channel; per-(image, channel) knot scalars live in SMEM for all steps.
# ----------------------------------------------------------------------------
def curve_kernel(x_ref, kp_ref, rgb_ref, *, num_knots):
    bc = pl.program_id(0)                                # image*3 + channel
    curve_steps = num_knots - 1

    img = jnp.clip(x_ref[0].astype(jnp.float32), 0.0, 1.0)   # torch.clamp(img, 0, 1)
    t = img * float(curve_steps)                         # hoisted out of segment loop

    # scale = K[0] + sum_i slope[i] * clamp(img*curve_steps - i, 0, 1)
    # K[0] folded into the first segment (no zero-init of the accumulator).
    # CURL quirk preserved: loop over range(slope.shape[0]-1) -> last slope unused.
    # TODO(synk): verify against the reference CureApply whether all k-1 slopes apply.
    if num_knots >= 3:
        scale = kp_ref[bc, 0] + kp_ref[bc, 1] * jnp.clip(t, 0.0, 1.0)
        for i in range(1, num_knots - 2):
            scale = scale + kp_ref[bc, 1 + i] * jnp.clip(t - float(i), 0.0, 1.0)
    else:
        scale = kp_ref[bc, 0] + jnp.zeros_like(img)

    rgb_ref[0] = jnp.clip(img * scale, 0.0, 1.0).astype(rgb_ref.dtype)


def curve_apply(x_tiles, kparams, *, num_knots, tile_rows):
    BC, rows_pad, _ = x_tiles.shape
    kernel = functools.partial(curve_kernel, num_knots=num_knots)
    return pl.pallas_call(
        kernel,
        out_shape=jax.ShapeDtypeStruct(x_tiles.shape, x_tiles.dtype),
        grid_spec=pltpu.PrefetchScalarGridSpec(
            num_scalar_prefetch=0,
            grid=(BC, rows_pad // tile_rows),
            in_specs=[
                pl.BlockSpec((1, tile_rows, 128), lambda bc, p: (bc, p, 0)),
                pl.BlockSpec(memory_space=pltpu.MemorySpace.SMEM),
            ],
            out_specs=pl.BlockSpec((1, tile_rows, 128), lambda bc, p: (bc, p, 0)),
        ),
        compiler_params=pltpu.CompilerParams(
            dimension_semantics=("parallel", "parallel"),
            vmem_limit_bytes=_VMEM_LIMIT),
    )(x_tiles, kparams)


# ----------------------------------------------------------------------------
# Parameters & forward wrapper
# ----------------------------------------------------------------------------
def init_params(key, features=32, knot_channels=64, knot_points=36):
    assert knot_points % 3 == 0
    k1, k2, k3 = jax.random.split(key, 3)
    return {
        # Kernel-friendly (out, in) weight layouts; biases as (out, 1) columns.
        "w1": 0.2 * jax.random.normal(k1, (features, 3), jnp.float32),
        "b1": jnp.zeros((features, 1), jnp.float32),
        "w2": 0.1 * jax.random.normal(k2, (knot_channels, features), jnp.float32),
        "b2": jnp.zeros((knot_channels, 1), jnp.float32),
        "w_fc": 0.05 * jax.random.normal(k3, (knot_points, knot_channels), jnp.float32),
        "b_fc": jnp.zeros((knot_points,), jnp.float32),
    }


def curl_transformer_forward(params, x, *, down_factor=1,
                             backbone_tile_pixels=16384, curve_tile_rows=2048):
    B, c_in, H, W = x.shape
    assert c_in == 3
    assert down_factor == 1
    # TODO(synk): bilinear-downsample branch (down_factor > 1) not implemented;
    # this script covers the down_factor == 1 (identity) branch of the reference.
    P = H * W

    # ---- backbone stand-in + global average pool (fused Pallas kernel) ----
    tile_p, P_pad = _backbone_tiling(P, backbone_tile_pixels)
    x_chan = x.reshape(B, 3, P)                          # free view of NCHW (no transpose)
    if P_pad > P:
        x_chan = jnp.pad(x_chan, ((0, 0), (0, 0), (0, P_pad - P)))
    pooled = backbone_pool(x_chan, params, tile_p=tile_p, num_valid=P)   # (B, C)
    # TODO(synk): torch.nn.Dropout(0.5) treated as inference-mode identity.

    # ---- fc head + knot math + gradient regulariser: tiny, stays in plain XLA ----
    r = pooled @ params["w_fc"].T + params["b_fc"]       # (B, knot_points)
    KP = r.shape[1]
    k = KP // 3
    knots = jnp.exp(r.reshape(B, 3, k))                  # (B, 3, k)   R_c = exp(r_c)
    slope = knots[:, :, 1:] - knots[:, :, :-1]           # (B, 3, k-1)
    # TODO(synk): verify regulariser reduction/normalisation against reference CureApply.
    reg = jnp.sum((slope[:, :, 1:] - slope[:, :, :-1]) ** 2, axis=(1, 2))   # (B,)
    # Pack per-(image, channel) curve params for SMEM: [knot0, slope_0..slope_{k-2}]
    kparams = jnp.concatenate([knots[:, :, :1], slope], axis=2)
    kparams = kparams.reshape(B * 3, k).astype(jnp.float32)

    # ---- CURL curve application on the full-resolution image ----
    tile_rows, rows_pad = _curve_tiling(P, curve_tile_rows)
    x_flat = x.reshape(B * 3, P)                         # free view
    pad_px = rows_pad * 128 - P
    if pad_px > 0:
        x_flat = jnp.pad(x_flat, ((0, 0), (0, pad_px)))
    x_tiles = x_flat.reshape(B * 3, rows_pad, 128)       # full sublane/lane packing
    rgb_tiles = curve_apply(x_tiles, kparams, num_knots=k, tile_rows=tile_rows)
    rgb_flat = rgb_tiles.reshape(B * 3, rows_pad * 128)
    if pad_px > 0:
        rgb_flat = rgb_flat[:, :P]
    rgb = rgb_flat.reshape(B, 3, H, W)
    return rgb, reg


if __name__ == "__main__":
    key = jax.random.PRNGKey(0)
    xkey, pkey = jax.random.split(key)
    x = jax.random.uniform(xkey, (2, 3, 16, 16), dtype=jnp.float32)
    params = init_params(pkey)

    fwd = jax.jit(curl_transformer_forward)
    rgb, reg = fwd(params, x)
    jax.block_until_ready((rgb, reg))

    assert rgb.shape == (2, 3, 16, 16) and reg.shape == (2,)
    assert bool(jnp.all(jnp.isfinite(rgb))) and bool(jnp.all(jnp.isfinite(reg)))
    assert bool(jnp.all(rgb >= 0.0)) and bool(jnp.all(rgb <= 1.0))

    # bf16 image I/O path (halves HBM traffic of both image-bound passes).
    rgb16, reg16 = fwd(params, x.astype(jnp.bfloat16))
    jax.block_until_ready((rgb16, reg16))
    assert rgb16.shape == (2, 3, 16, 16) and rgb16.dtype == jnp.bfloat16
    assert bool(jnp.all(jnp.isfinite(rgb16.astype(jnp.float32))))
    assert bool(jnp.all(jnp.isfinite(reg16)))

    print("KERNEL_OK")
</pallas_src>

<mosaic_0001>
module attributes {stable_mosaic.version = 11 : i64} {
  func.func @backbone_pool_kernel(%arg0: i32, %arg1: i32, %arg2: memref<1x3x256xf32, #tpu.memory_space<vmem>>, %arg3: memref<32x3xf32, #tpu.memory_space<vmem>>, %arg4: memref<32x1xf32, #tpu.memory_space<vmem>>, %arg5: memref<64x32xbf16, #tpu.memory_space<vmem>>, %arg6: memref<64x1xf32, #tpu.memory_space<vmem>>, %arg7: memref<1x1x64x1xf32, #tpu.memory_space<vmem>>) attributes {dimension_semantics = [#tpu.dimension_semantics<parallel>, #tpu.dimension_semantics<parallel>], iteration_bounds = array<i64: 2, 1>, scalar_prefetch = 0 : i64, scratch_operands = 0 : i64, tpu.core_type = #tpu.core_type<tc>, window_params = [{transform_indices = @transform_0, window_bounds = array<i64: 1, 3, 256>}, {pipeline_mode = #tpu.pipeline_mode<synchronous>, transform_indices = @transform_1, window_bounds = array<i64: 32, 3>}, {pipeline_mode = #tpu.pipeline_mode<synchronous>, transform_indices = @transform_2, window_bounds = array<i64: 32, 1>}, {pipeline_mode = #tpu.pipeline_mode<synchronous>, transform_indices = @transform_3, window_bounds = array<i64: 64, 32>}, {pipeline_mode = #tpu.pipeline_mode<synchronous>, transform_indices = @transform_4, window_bounds = array<i64: 64, 1>}, {transform_indices = @transform_5, window_bounds = array<i64: 1, 1, 64, 1>}]} {
    %c0 = arith.constant 0 : index
    %c0_0 = arith.constant 0 : index
    %c0_1 = arith.constant 0 : index
    %0 = vector.load %arg2[%c0, %c0_0, %c0_1] : memref<1x3x256xf32, #tpu.memory_space<vmem>>, vector<1x3x256xf32>
    %1 = vector.shape_cast %0 : vector<1x3x256xf32> to vector<3x256xf32>
    %c0_2 = arith.constant 0 : index
    %c0_3 = arith.constant 0 : index
    %2 = vector.load %arg3[%c0_2, %c0_3] : memref<32x3xf32, #tpu.memory_space<vmem>>, vector<32x3xf32>
    %3 = vector.extract_strided_slice %2 {offsets = [0, 0], sizes = [32, 1], strides = [1, 1]} : vector<32x3xf32> to vector<32x1xf32>
    %4 = vector.extract_strided_slice %1 {offsets = [0, 0], sizes = [1, 256], strides = [1, 1]} : vector<3x256xf32> to vector<1x256xf32>
    %5 = vector.broadcast %3 : vector<32x1xf32> to vector<32x256xf32>
    %6 = vector.broadcast %4 : vector<1x256xf32> to vector<32x256xf32>
    %7 = arith.mulf %5, %6 : vector<32x256xf32>
    %8 = vector.extract_strided_slice %2 {offsets = [0, 1], sizes = [32, 1], strides = [1, 1]} : vector<32x3xf32> to vector<32x1xf32>
    %9 = vector.extract_strided_slice %1 {offsets = [1, 0], sizes = [1, 256], strides = [1, 1]} : vector<3x256xf32> to vector<1x256xf32>
    %10 = vector.broadcast %8 : vector<32x1xf32> to vector<32x256xf32>
    %11 = vector.broadcast %9 : vector<1x256xf32> to vector<32x256xf32>
    %12 = arith.mulf %10, %11 : vector<32x256xf32>
    %13 = arith.addf %7, %12 : vector<32x256xf32>
    %14 = vector.extract_strided_slice %2 {offsets = [0, 2], sizes = [32, 1], strides = [1, 1]} : vector<32x3xf32> to vector<32x1xf32>
    %15 = vector.extract_strided_slice %1 {offsets = [2, 0], sizes = [1, 256], strides = [1, 1]} : vector<3x256xf32> to vector<1x256xf32>
    %16 = vector.broadcast %14 : vector<32x1xf32> to vector<32x256xf32>
    %17 = vector.broadcast %15 : vector<1x256xf32> to vector<32x256xf32>
    %18 = arith.mulf %16, %17 : vector<32x256xf32>
    %19 = arith.addf %13, %18 : vector<32x256xf32>
    %c0_4 = arith.constant 0 : index
    %c0_5 = arith.constant 0 : index
    %20 = vector.load %arg4[%c0_4, %c0_5] : memref<32x1xf32, #tpu.memory_space<vmem>>, vector<32x1xf32>
    %21 = vector.broadcast %20 : vector<32x1xf32> to vector<32x256xf32>
    %22 = arith.addf %19, %21 : vector<32x256xf32>
    %cst = arith.constant 0.000000e+00 : f32
    %23 = vector.broadcast %cst : f32 to vector<32x256xf32>
    %24 = arith.maximumf %22, %23 : vector<32x256xf32>
    %c0_6 = arith.constant 0 : index
    %c0_7 = arith.constant 0 : index
    %25 = vector.load %arg5[%c0_6, %c0_7] : memref<64x32xbf16, #tpu.memory_space<vmem>>, vector<64x32xbf16>
    %26 = arith.truncf %24 : vector<32x256xf32> to vector<32x256xbf16>
    %cst_8 = arith.constant dense<0.000000e+00> : vector<64x256xf32>
    %27 = tpu.matmul %25, %26, %cst_8 {dimension_numbers = #tpu.dot_dimension_numbers<[1], [0], [0], [1], [0, 0, 1, 1], [], []>} : vector<64x32xbf16>, vector<32x256xbf16>, vector<64x256xf32> -> vector<64x256xf32>
    %c0_9 = arith.constant 0 : index
    %c0_10 = arith.constant 0 : index
    %28 = vector.load %arg6[%c0_9, %c0_10] : memref<64x1xf32, #tpu.memory_space<vmem>>, vector<64x1xf32>
    %29 = vector.broadcast %28 : vector<64x1xf32> to vector<64x256xf32>
    %30 = arith.addf %27, %29 : vector<64x256xf32>
    %cst_11 = arith.constant 0.000000e+00 : f32
    %31 = vector.broadcast %cst_11 : f32 to vector<64x256xf32>
    %32 = arith.maximumf %30, %31 : vector<64x256xf32>
    %cst_12 = arith.constant dense<0.000000e+00> : vector<64xf32>
    %33 = vector.multi_reduction <add>, %32, %cst_12 [1] : vector<64x256xf32> to vector<64xf32>
    %34 = vector.shape_cast %33 : vector<64xf32> to vector<64x1xf32>
    %c0_13 = arith.constant 0 : index
    %c0_14 = arith.constant 0 : index
    %c0_15 = arith.constant 0 : index
    %c0_16 = arith.constant 0 : index
    %35 = vector.load %arg7[%c0_13, %c0_14, %c0_15, %c0_16] : memref<1x1x64x1xf32, #tpu.memory_space<vmem>>, vector<1x1x64x1xf32>
    %36 = vector.shape_cast %35 : vector<1x1x64x1xf32> to vector<64x1xf32>
    %37 = vector.shape_cast %34 : vector<64x1xf32> to vector<1x1x64x1xf32>
    tpu.vector_store %arg7[%c0_13, %c0_14, %c0_15, %c0_16], %37 {strides = array<i32>} : memref<1x1x64x1xf32, #tpu.memory_space<vmem>>, vector<1x1x64x1xf32>,
    return
  }
  func.func @transform_0(%arg0: i32, %arg1: i32) -> (i32, i32, i32) {
    %c0_i32 = arith.constant 0 : i32
    %c0_i32_0 = arith.constant 0 : i32
    return %arg0, %c0_i32, %arg1 : i32, i32, i32
  }
  func.func @transform_1(%arg0: i32, %arg1: i32) -> (i32, i32) {
    %c0_i32 = arith.constant 0 : i32
    %c0_i32_0 = arith.constant 0 : i32
    %c0_i32_1 = arith.constant 0 : i32
    return %c0_i32, %c0_i32_0 : i32, i32
  }
  func.func @transform_2(%arg0: i32, %arg1: i32) -> (i32, i32) {
    %c0_i32 = arith.constant 0 : i32
    %c0_i32_0 = arith.constant 0 : i32
    %c0_i32_1 = arith.constant 0 : i32
    return %c0_i32, %c0_i32_0 : i32, i32
  }
  func.func @transform_3(%arg0: i32, %arg1: i32) -> (i32, i32) {
    %c0_i32 = arith.constant 0 : i32
    %c0_i32_0 = arith.constant 0 : i32
    %c0_i32_1 = arith.constant 0 : i32
    return %c0_i32, %c0_i32_0 : i32, i32
  }
  func.func @transform_4(%arg0: i32, %arg1: i32) -> (i32, i32) {
    %c0_i32 = arith.constant 0 : i32
    %c0_i32_0 = arith.constant 0 : i32
    %c0_i32_1 = arith.constant 0 : i32
    return %c0_i32, %c0_i32_0 : i32, i32
  }
  func.func @transform_5(%arg0: i32, %arg1: i32) -> (i32, i32, i32, i32) {
    %c0_i32 = arith.constant 0 : i32
    %c0_i32_0 = arith.constant 0 : i32
    %c0_i32_1 = arith.constant 0 : i32
    return %arg0, %arg1, %c0_i32, %c0_i32_0 : i32, i32, i32, i32
  }
}

module attributes {stable_mosaic.version = 11 : i64} {
  func.func @curve_kernel(%arg0: i32, %arg1: i32, %arg2: memref<1x2x128xf32, #tpu.memory_space<vmem>>, %arg3: memref<6x12xf32, #tpu.memory_space<smem>>, %arg4: memref<1x2x128xf32, #tpu.memory_space<vmem>>) attributes {dimension_semantics = [#tpu.dimension_semantics<parallel>, #tpu.dimension_semantics<parallel>], iteration_bounds = array<i64: 6, 1>, scalar_prefetch = 0 : i64, scratch_operands = 0 : i64, tpu.core_type = #tpu.core_type<tc>, window_params = [{transform_indices = @transform_0, window_bounds = array<i64: 1, 2, 128>}, {transform_indices = @transform_1, window_bounds = array<i64: 6, 12>}, {transform_indices = @transform_2, window_bounds = array<i64: 1, 2, 128>}]} {
    %c0 = arith.constant 0 : index
    %c0_0 = arith.constant 0 : index
    %c0_1 = arith.constant 0 : index
    %0 = vector.load %arg2[%c0, %c0_0, %c0_1] : memref<1x2x128xf32, #tpu.memory_space<vmem>>, vector<1x2x128xf32>
    %1 = vector.shape_cast %0 : vector<1x2x128xf32> to vector<2x128xf32>
    %cst = arith.constant 0.000000e+00 : f32
    %cst_2 = arith.constant 1.000000e+00 : f32
    %2 = vector.broadcast %cst : f32 to vector<2x128xf32>
    %3 = arith.maximumf %2, %1 : vector<2x128xf32>
    %4 = vector.broadcast %cst_2 : f32 to vector<2x128xf32>
    %5 = arith.minimumf %4, %3 : vector<2x128xf32>
    %cst_3 = arith.constant 1.100000e+01 : f32
    %6 = vector.broadcast %cst_3 : f32 to vector<2x128xf32>
    %7 = arith.mulf %5, %6 : vector<2x128xf32>
    %8 = arith.index_cast %arg0 : i32 to index
    %c0_4 = arith.constant 0 : index
    %9 = memref.load %arg3[%8, %c0_4] : memref<6x12xf32, #tpu.memory_space<smem>>
    %10 = arith.index_cast %arg0 : i32 to index
    %c1 = arith.constant 1 : index
    %11 = memref.load %arg3[%10, %c1] : memref<6x12xf32, #tpu.memory_space<smem>>
    %cst_5 = arith.constant 0.000000e+00 : f32
    %cst_6 = arith.constant 1.000000e+00 : f32
    %12 = vector.broadcast %cst_5 : f32 to vector<2x128xf32>
    %13 = arith.maximumf %12, %7 : vector<2x128xf32>
    %14 = vector.broadcast %cst_6 : f32 to vector<2x128xf32>
    %15 = arith.minimumf %14, %13 : vector<2x128xf32>
    %16 = vector.broadcast %11 : f32 to vector<2x128xf32>
    %17 = arith.mulf %16, %15 : vector<2x128xf32>
    %18 = vector.broadcast %9 : f32 to vector<2x128xf32>
    %19 = arith.addf %18, %17 : vector<2x128xf32>
    %20 = arith.index_cast %arg0 : i32 to index
    %c2 = arith.constant 2 : index
    %21 = memref.load %arg3[%20, %c2] : memref<6x12xf32, #tpu.memory_space<smem>>
    %cst_7 = arith.constant 1.000000e+00 : f32
    %22 = vector.broadcast %cst_7 : f32 to vector<2x128xf32>
    %23 = arith.subf %7, %22 : vector<2x128xf32>
    %cst_8 = arith.constant 0.000000e+00 : f32
    %cst_9 = arith.constant 1.000000e+00 : f32
    %24 = vector.broadcast %cst_8 : f32 to vector<2x128xf32>
    %25 = arith.maximumf %24, %23 : vector<2x128xf32>
    %26 = vector.broadcast %cst_9 : f32 to vector<2x128xf32>
    %27 = arith.minimumf %26, %25 : vector<2x128xf32>
    %28 = vector.broadcast %21 : f32 to vector<2x128xf32>
    %29 = arith.mulf %28, %27 : vector<2x128xf32>
    %30 = arith.addf %19, %29 : vector<2x128xf32>
    %31 = arith.index_cast %arg0 : i32 to index
    %c3 = arith.constant 3 : index
    %32 = memref.load %arg3[%31, %c3] : memref<6x12xf32, #tpu.memory_space<smem>>
    %cst_10 = arith.constant 2.000000e+00 : f32
    %33 = vector.broadcast %cst_10 : f32 to vector<2x128xf32>
    %34 = arith.subf %7, %33 : vector<2x128xf32>
    %cst_11 = arith.constant 0.000000e+00 : f32
    %cst_12 = arith.constant 1.000000e+00 : f32
    %35 = vector.broadcast %cst_11 : f32 to vector<2x128xf32>
    %36 = arith.maximumf %35, %34 : vector<2x128xf32>
    %37 = vector.broadcast %cst_12 : f32 to vector<2x128xf32>
    %38 = arith.minimumf %37, %36 : vector<2x128xf32>
    %39 = vector.broadcast %32 : f32 to vector<2x128xf32>
    %40 = arith.mulf %39, %38 : vector<2x128xf32>
    %41 = arith.addf %30, %40 : vector<2x128xf32>
    %42 = arith.index_cast %arg0 : i32 to index
    %c4 = arith.constant 4 : index
    %43 = memref.load %arg3[%42, %c4] : memref<6x12xf32, #tpu.memory_space<smem>>
    %cst_13 = arith.constant 3.000000e+00 : f32
    %44 = vector.broadcast %cst_13 : f32 to vector<2x128xf32>
    %45 = arith.subf %7, %44 : vector<2x128xf32>
    %cst_14 = arith.constant 0.000000e+00 : f32
    %cst_15 = arith.constant 1.000000e+00 : f32
    %46 = vector.broadcast %cst_14 : f32 to vector<2x128xf32>
    %47 = arith.maximumf %46, %45 : vector<2x128xf32>
    %48 = vector.broadcast %cst_15 : f32 to vector<2x128xf32>
    %49 = arith.minimumf %48, %47 : vector<2x128xf32>
    %50 = vector.broadcast %43 : f32 to vector<2x128xf32>
    %51 = arith.mulf %50, %49 : vector<2x128xf32>
    %52 = arith.addf %41, %51 : vector<2x128xf32>
    %53 = arith.index_cast %arg0 : i32 to index
    %c5 = arith.constant 5 : index
    %54 = memref.load %arg3[%53, %c5] : memref<6x12xf32, #tpu.memory_space<smem>>
    %cst_16 = arith.constant 4.000000e+00 : f32
    %55 = vector.broadcast %cst_16 : f32 to vector<2x128xf32>
    %56 = arith.subf %7, %55 : vector<2x128xf32>
    %cst_17 = arith.constant 0.000000e+00 : f32
    %cst_18 = arith.constant 1.000000e+00 : f32
    %57 = vector.broadcast %cst_17 : f32 to vector<2x128xf32>
    %58 = arith.maximumf %57, %56 : vector<2x128xf32>
    %59 = vector.broadcast %cst_18 : f32 to vector<2x128xf32>
    %60 = arith.minimumf %59, %58 : vector<2x128xf32>
    %61 = vector.broadcast %54 : f32 to vector<2x128xf32>
    %62 = arith.mulf %61, %60 : vector<2x128xf32>
    %63 = arith.addf %52, %62 : vector<2x128xf32>
    %64 = arith.index_cast %arg0 : i32 to index
    %c6 = arith.constant 6 : index
    %65 = memref.load %arg3[%64, %c6] : memref<6x12xf32, #tpu.memory_space<smem>>
    %cst_19 = arith.constant 5.000000e+00 : f32
    %66 = vector.broadcast %cst_19 : f32 to vector<2x128xf32>
    %67 = arith.subf %7, %66 : vector<2x128xf32>
    %cst_20 = arith.constant 0.000000e+00 : f32
    %cst_21 = arith.constant 1.000000e+00 : f32
    %68 = vector.broadcast %cst_20 : f32 to vector<2x128xf32>
    %69 = arith.maximumf %68, %67 : vector<2x128xf32>
    %70 = vector.broadcast %cst_21 : f32 to vector<2x128xf32>
    %71 = arith.minimumf %70, %69 : vector<2x128xf32>
    %72 = vector.broadcast %65 : f32 to vector<2x128xf32>
    %73 = arith.mulf %72, %71 : vector<2x128xf32>
    %74 = arith.addf %63, %73 : vector<2x128xf32>
    %75 = arith.index_cast %arg0 : i32 to index
    %c7 = arith.constant 7 : index
    %76 = memref.load %arg3[%75, %c7] : memref<6x12xf32, #tpu.memory_space<smem>>
    %cst_22 = arith.constant 6.000000e+00 : f32
    %77 = vector.broadcast %cst_22 : f32 to vector<2x128xf32>
    %78 = arith.subf %7, %77 : vector<2x128xf32>
    %cst_23 = arith.constant 0.000000e+00 : f32
    %cst_24 = arith.constant 1.000000e+00 : f32
    %79 = vector.broadcast %cst_23 : f32 to vector<2x128xf32>
    %80 = arith.maximumf %79, %78 : vector<2x128xf32>
    %81 = vector.broadcast %cst_24 : f32 to vector<2x128xf32>
    %82 = arith.minimumf %81, %80 : vector<2x128xf32>
    %83 = vector.broadcast %76 : f32 to vector<2x128xf32>
    %84 = arith.mulf %83, %82 : vector<2x128xf32>
    %85 = arith.addf %74, %84 : vector<2x128xf32>
    %86 = arith.index_cast %arg0 : i32 to index
    %c8 = arith.constant 8 : index
    %87 = memref.load %arg3[%86, %c8] : memref<6x12xf32, #tpu.memory_space<smem>>
    %cst_25 = arith.constant 7.000000e+00 : f32
    %88 = vector.broadcast %cst_25 : f32 to vector<2x128xf32>
    %89 = arith.subf %7, %88 : vector<2x128xf32>
    %cst_26 = arith.constant 0.000000e+00 : f32
    %cst_27 = arith.constant 1.000000e+00 : f32
    %90 = vector.broadcast %cst_26 : f32 to vector<2x128xf32>
    %91 = arith.maximumf %90, %89 : vector<2x128xf32>
    %92 = vector.broadcast %cst_27 : f32 to vector<2x128xf32>
    %93 = arith.minimumf %92, %91 : vector<2x128xf32>
    %94 = vector.broadcast %87 : f32 to vector<2x128xf32>
    %95 = arith.mulf %94, %93 : vector<2x128xf32>
    %96 = arith.addf %85, %95 : vector<2x128xf32>
    %97 = arith.index_cast %arg0 : i32 to index
    %c9 = arith.constant 9 : index
    %98 = memref.load %arg3[%97, %c9] : memref<6x12xf32, #tpu.memory_space<smem>>
    %cst_28 = arith.constant 8.000000e+00 : f32
    %99 = vector.broadcast %cst_28 : f32 to vector<2x128xf32>
    %100 = arith.subf %7, %99 : vector<2x128xf32>
    %cst_29 = arith.constant 0.000000e+00 : f32
    %cst_30 = arith.constant 1.000000e+00 : f32
    %101 = vector.broadcast %cst_29 : f32 to vector<2x128xf32>
    %102 = arith.maximumf %101, %100 : vector<2x128xf32>
    %103 = vector.broadcast %cst_30 : f32 to vector<2x128xf32>
    %104 = arith.minimumf %103, %102 : vector<2x128xf32>
    %105 = vector.broadcast %98 : f32 to vector<2x128xf32>
    %106 = arith.mulf %105, %104 : vector<2x128xf32>
    %107 = arith.addf %96, %106 : vector<2x128xf32>
    %108 = arith.index_cast %arg0 : i32 to index
    %c10 = arith.constant 10 : index
    %109 = memref.load %arg3[%108, %c10] : memref<6x12xf32, #tpu.memory_space<smem>>
    %cst_31 = arith.constant 9.000000e+00 : f32
    %110 = vector.broadcast %cst_31 : f32 to vector<2x128xf32>
    %111 = arith.subf %7, %110 : vector<2x128xf32>
    %cst_32 = arith.constant 0.000000e+00 : f32
    %cst_33 = arith.constant 1.000000e+00 : f32
    %112 = vector.broadcast %cst_32 : f32 to vector<2x128xf32>
    %113 = arith.maximumf %112, %111 : vector<2x128xf32>
    %114 = vector.broadcast %cst_33 : f32 to vector<2x128xf32>
    %115 = arith.minimumf %114, %113 : vector<2x128xf32>
    %116 = vector.broadcast %109 : f32 to vector<2x128xf32>
    %117 = arith.mulf %116, %115 : vector<2x128xf32>
    %118 = arith.addf %107, %117 : vector<2x128xf32>
    %119 = arith.mulf %5, %118 : vector<2x128xf32>
    %cst_34 = arith.constant 0.000000e+00 : f32
    %cst_35 = arith.constant 1.000000e+00 : f32
    %120 = vector.broadcast %cst_34 : f32 to vector<2x128xf32>
    %121 = arith.maximumf %120, %119 : vector<2x128xf32>
    %122 = vector.broadcast %cst_35 : f32 to vector<2x128xf32>
    %123 = arith.minimumf %122, %121 : vector<2x128xf32>
    %c0_36 = arith.constant 0 : index
    %c0_37 = arith.constant 0 : index
    %c0_38 = arith.constant 0 : index
    %124 = vector.load %arg4[%c0_36, %c0_37, %c0_38] : memref<1x2x128xf32, #tpu.memory_space<vmem>>, vector<1x2x128xf32>
    %125 = vector.shape_cast %124 : vector<1x2x128xf32> to vector<2x128xf32>
    %126 = vector.shape_cast %123 : vector<2x128xf32> to vector<1x2x128xf32>
    tpu.vector_store %arg4[%c0_36, %c0_37, %c0_38], %126 {strides = array<i32>} : memref<1x2x128xf32, #tpu.memory_space<vmem>>, vector<1x2x128xf32>,
    return
  }
  func.func @transform_0(%arg0: i32, %arg1: i32) -> (i32, i32, i32) {
    %c0_i32 = arith.constant 0 : i32
    %c0_i32_0 = arith.constant 0 : i32
    return %arg0, %arg1, %c0_i32 : i32, i32, i32
  }
  func.func @transform_1(%arg0: i32, %arg1: i32) -> (i32, i32) {
    %c0_i32 = arith.constant 0 : i32
    %c0_i32_0 = arith.constant 0 : i32
    %c0_i32_1 = arith.constant 0 : i32
    return %c0_i32, %c0_i32_0 : i32, i32
  }
  func.func @transform_2(%arg0: i32, %arg1: i32) -> (i32, i32, i32) {
    %c0_i32 = arith.constant 0 : i32
    %c0_i32_0 = arith.constant 0 : i32
    return %arg0, %arg1, %c0_i32 : i32, i32, i32
  }
}

</mosaic_0001>

<llo_original>
// kernel: curl_transformer_forward.3
$region0: #{curl_transformer_forward.3}
  #allocation0 [shape = 'u32[]', space=smem, size = 0x4, offset = 0x4, fixed_abs, tag = 'smem constant byte address 0x4 - core index']
  #allocation1 [shape = 'u32[144,128]{1,0:T(1,128)}', space=vmem, size = 0x12000, scoped, tag = 'internal scratch']
  %s0 = inlined_call_operand.vmem [shape: f32[6,2,128], index: 0, kind: input, shape index: {}]
  %s1 = inlined_call_operand.vmem [shape: f32[6,12], index: 1, kind: input, shape index: {}]
  %s2 = inlined_call_operand.vmem [shape: f32[6,2,128], index: 2, kind: output, shape index: {}]
  %s3 = sld [smem:[#allocation0]]
  $region45: #{curl_transformer_forward.3} parent=0
    _
  %s5 = ssub.s32 1, %s3
  %s6 = scalar_select 0, %s5, %s3
  $region1: #{curl_transformer_forward.3} parent=0
    #allocation2 [shape = 'u8[4096]{0}', space=smem, size = 0x1000, scoped, tag = 'input window, operand 1, single buffered']
    #allocation3 [shape = 's32[2]{0}', space=sflag, size = 0x8, scoped, tag = 'scoped memory for curl_transformer_forward.3']
    %7 = vsyncpa [#allocation3], 0
    loop: start=0, step=1, limit=8
    $region2: #{curl_transformer_forward.3} parent=1 // loop_pre_header
      _
    $region3: #{curl_transformer_forward.3} parent=1 // loop_header
      %s9 = sphi 0, %s13
      %p10 = scmp.ge.s32.totalorder %s9, 8
      %s16 = sphi 0, %s28
      %s17 = sphi 0, %s24
      %s18 = sphi 0, %s16
      %s19 = sphi 0, %s17
      %s20 = sphi 0, %s18
      %s21 = sphi 0, %s19
      %s33 = sphi 0, %s35
      %s36 = sphi 0, %s33
      %s37 = sphi 0, %s36
      %s53 = sphi 0, %s37
      %s57 = sphi 0, %s57
      %s59 = sphi 0, %s57
      %s60 = sphi 0, %s59
      %s74 = sphi 0, %s60
      %s82 = sphi 0, %s84
      %s85 = sphi 0, %s82
      %s86 = sphi 0, %s85
      %s102 = sphi 0, %s86
    $region4: #{curl_transformer_forward.3} parent=1 // loop_header_branch
      %12 = sbr.rel (%p10) target = $region8
    $region5: #{curl_transformer_forward.3} parent=1 // loop_body
      %s14 = ssub.s32 %s9, 1
      %s15 = ssub.s32 %s9, 2
      %s22 = sadd.s32 1, %s17
      %p23 = scmp.ge.s32.totalorder %s22, 1
      %s24 = scalar_select %p23, 0, %s22
      %s25 = sadd.s32 1, %s16
      %s26 = scalar_select %p23, %s25, %s16
      %p27 = scmp.ge.s32.totalorder %s26, 6
      %s28 = scalar_select %p27, 0, %s26
      %s29 = ssub.s32 %s16, %s28
      %s30 = ssub.s32 %s17, %s24
      %s31 = sor.u32 %s29, %s30
      %p32 = scmp.eq.s32.totalorder %s31, 0
      %s34 = sadd.s32 %s33, 1
      %s35 = scalar_select %p32, %s33, %s34
      %p38 = pneg %p32
      %p39 = scmp.eq.s32.totalorder %s9, 5
      %p40 = por %p38, %p39
      %p41 = scmp.ne.s32.totalorder %s33, %s36
      %p42 = scmp.eq.s32.totalorder %s9, 0
      %p43 = por %p41, %p42
      %p44 = scmp.ne.s32.totalorder %s33, %s36
      %p45 = scmp.eq.s32.totalorder %s14, 5
      %p46 = por %p44, %p45
      %p47 = scmp.ne.s32.totalorder %s36, %s37
      %p48 = scmp.eq.s32.totalorder %s14, 0
      %p49 = por %p47, %p48
      %p50 = scmp.ne.s32.totalorder %s36, %s37
      %p51 = scmp.eq.s32.totalorder %s15, 5
      %p52 = por %p50, %p51
      %p54 = scmp.ne.s32.totalorder %s37, %s53
      %p55 = scmp.eq.s32.totalorder %s15, 0
      %p56 = por %p54, %p55
      %s58 = sadd.s32 %s57, 1
      %p61 = scmp.eq.s32.totalorder %s9, 5
      %p62 = scmp.ne.s32.totalorder %s57, %s59
      %p63 = scmp.eq.s32.totalorder %s9, 0
      %p64 = por %p62, %p63
      %p65 = scmp.ne.s32.totalorder %s57, %s59
      %p66 = scmp.eq.s32.totalorder %s14, 5
      %p67 = por %p65, %p66
      %p68 = scmp.ne.s32.totalorder %s59, %s60
      %p69 = scmp.eq.s32.totalorder %s14, 0
      %p70 = por %p68, %p69
      %p71 = scmp.ne.s32.totalorder %s59, %s60
      %p72 = scmp.eq.s32.totalorder %s15, 5
      %p73 = por %p71, %p72
      %p75 = scmp.ne.s32.totalorder %s60, %s74
      %p76 = scmp.eq.s32.totalorder %s15, 0
      %p77 = por %p75, %p76
      %s78 = ssub.s32 %s16, %s28
      %s79 = ssub.s32 %s17, %s24
      %s80 = sor.u32 %s78, %s79
      %p81 = scmp.eq.s32.totalorder %s80, 0
      %s83 = sadd.s32 %s82, 1
      %s84 = scalar_select %p81, %s82, %s83
      %p87 = pneg %p81
      %p88 = scmp.eq.s32.totalorder %s9, 5
      %p89 = por %p87, %p88
      %p90 = scmp.ne.s32.totalorder %s82, %s85
      %p91 = scmp.eq.s32.totalorder %s9, 0
      %p92 = por %p90, %p91
      %p93 = scmp.ne.s32.totalorder %s82, %s85
      %p94 = scmp.eq.s32.totalorder %s14, 5
      %p95 = por %p93, %p94
      %p96 = scmp.ne.s32.totalorder %s85, %s86
      %p97 = scmp.eq.s32.totalorder %s14, 0
      %p98 = por %p96, %p97
      %p99 = scmp.ne.s32.totalorder %s85, %s86
      %p100 = scmp.eq.s32.totalorder %s15, 5
      %p101 = por %p99, %p100
      %p103 = scmp.ne.s32.totalorder %s86, %s102
      %p104 = scmp.eq.s32.totalorder %s15, 0
      %p105 = por %p103, %p104
      %p106 = scmp.le.s32.totalorder 1, %s9
      %p107 = scmp.lt.s32.totalorder %s9, 7
      %p108 = pnand %p106, %p107
      %p109 = pneg %p108
      // Predicated region
      $region9: #{curl_transformer_forward.3} parent=5 // pred_check
        _
      $region10: #{curl_transformer_forward.3} parent=5 // pred_check_branch
        %111 = sbr.rel (%p108) target = $region12
      $region11: #{curl_transformer_forward.3} parent=5 // pred_region
        %s112 = ssub.s32 %s9, 1
        // Predicated region
        $region13: #{curl_transformer_forward.3} parent=11 // pred_check
          %p113 = pneg %p70
        $region14: #{curl_transformer_forward.3} parent=11 // pred_check_branch
          %115 = sbr.rel (%p113) target = $region16
        $region15: #{curl_transformer_forward.3} parent=11 // pred_region
          %s117 = ssub.s32 128, 128
          %118 = vsyncadd [#allocation3], %s117
          %s120 = sshll.u32 %s1, 4
          %s121 = int_to_ptr.vmem [resolvable:$true] %s120
          %123 = dma.vmem_to_smem %s121, 128, [#allocation2], [#allocation3]
        $region16: #{curl_transformer_forward.3} parent=11 // pred_fallthru
          _
      $region12: #{curl_transformer_forward.3} parent=5 // pred_fallthru
        _
      %p124 = scmp.lt.s32.totalorder %s9, 6
      // Predicated region
      $region17: #{curl_transformer_forward.3} parent=5 // pred_check
        %p125 = pneg %p124
      $region18: #{curl_transformer_forward.3} parent=5 // pred_check_branch
        %127 = sbr.rel (%p125) target = $region20
      $region19: #{curl_transformer_forward.3} parent=5 // pred_region
        // Predicated region
        $region21: #{curl_transformer_forward.3} parent=19 // pred_check
          %p128 = pneg %p43
        $region22: #{curl_transformer_forward.3} parent=19 // pred_check_branch
          %130 = sbr.rel (%p128) target = $region24
        $region23: #{curl_transformer_forward.3} parent=19 // pred_region
          %p131 = scmp.lt.s32.totalorder %s16, 5
          %s132 = scalar_select %p131, %s16, 5
          %p133 = scmp.lt.s32.totalorder %s17, 0
          %s134 = scalar_select %p133, %s17, 0
          %s135 = sadd.s32 %s134, %s132
          %s136 = smul.addr %s135, 2
          %s137 = scalar_lea.vmem %s0, %s136
        $region24: #{curl_transformer_forward.3} parent=19 // pred_fallthru
          _
      $region20: #{curl_transformer_forward.3} parent=5 // pred_fallthru
        _
      %p138 = scmp.le.s32.totalorder 1, %s9
      %p139 = scmp.lt.s32.totalorder %s9, 7
      %p140 = pnand %p138, %p139
      %p141 = pneg %p140
      // Predicated region
      $region25: #{curl_transformer_forward.3} parent=5 // pred_check
        _
      $region26: #{curl_transformer_forward.3} parent=5 // pred_check_branch
        %143 = sbr.rel (%p140) target = $region28
      $region27: #{curl_transformer_forward.3} parent=5 // pred_region
        %s144 = ssub.s32 %s9, 1
        // Predicated region
        $region29: #{curl_transformer_forward.3} parent=27 // pred_check
          %p145 = pneg %p70
        $region30: #{curl_transformer_forward.3} parent=27 // pred_check_branch
          %147 = sbr.rel (%p145) target = $region32
        $region31: #{curl_transformer_forward.3} parent=27 // pred_region
          %148 = dma.done [#allocation3], 128
        $region32: #{curl_transformer_forward.3} parent=27 // pred_fallthru
          _
        %149 = sfence
        %p150 = scmp.lt.s32.totalorder %s18, 5
        %s151 = scalar_select %p150, %s18, 5
        %p152 = scmp.lt.s32.totalorder %s19, 0
        %s153 = scalar_select %p152, %s19, 0
        %s154 = sadd.s32 %s153, %s151
        %s155 = smul.addr %s154, 2
        %s156 = scalar_lea.vmem %s0, %s155
        %p157 = pneg %p49
        %p158 = pneg %p46
        %p159 = pneg %p70
        %p160 = pneg %p67
        %p161 = pneg %p98
        %p162 = pneg %p95
        %p163 = scmp.lt.s32.totalorder %s18, 5
        %s164 = scalar_select %p163, %s18, 5
        %p165 = scmp.lt.s32.totalorder %s19, 0
        %s166 = scalar_select %p165, %s19, 0
        %s167 = sadd.s32 %s166, %s164
        %s168 = smul.addr %s167, 2
        %s169 = scalar_lea.vmem %s2, %s168
        %p170 = scmp.lt.s32.totalorder %s18, 5
        %s171 = scalar_select %p170, %s18, 5
        %p172 = scmp.lt.s32.totalorder %s19, 0
        %s173 = scalar_select %p172, %s19, 0
        %s174 = sadd.s32 %s173, %s171
        %s175 = smul.addr %s174, 2
        %s176 = scalar_lea.vmem %s0, %s175
        %p177 = scmp.lt.s32.totalorder %s18, 5
        %s178 = scalar_select %p177, %s18, 5
        %p179 = scmp.lt.s32.totalorder %s19, 0
        %s180 = scalar_select %p179, %s19, 0
        %s181 = sadd.s32 %s180, %s178
        %s182 = smul.addr %s181, 2
        %s183 = scalar_lea.vmem %s2, %s182
        %v184 = vld [vmem:[%s176] sm:$0x3]
        %v185 = vmax.f32 %v184, 0.0
        %v186 = vmin.f32 %v185, 1.0
        %v187 = vmul.f32 %v186, 11.0
        %s188 = smul.u32 %s18, 128
        %s189 = sld [smem:[#allocation2 + %s188]]
        %s190 = sadd.s32 %s188, 1
        %s191 = sld [smem:[#allocation2 + %s190]]
        %v192 = vmax.f32 %v187, 0.0
        %v193 = vmin.f32 %v192, 1.0
        %v194 = vstv %s191
        %v195 = vmul.f32 %v194, %v193
        %v196 = vstv %s189
        %v197 = vadd.f32 %v196, %v195
        %s198 = sadd.s32 %s188, 2
        %s199 = sld [smem:[#allocation2 + %s198]]
        %v200 = vsub.f32 %v187, 1.0
        %v201 = vmax.f32 %v200, 0.0
        %v202 = vmin.f32 %v201, 1.0
        %v203 = vstv %s199
        %v204 = vmul.f32 %v203, %v202
        %v205 = vadd.f32 %v197, %v204
        %s206 = sadd.s32 %s188, 3
        %s207 = sld [smem:[#allocation2 + %s206]]
        %v208 = vsub.f32 %v187, 2.0
        %v209 = vmax.f32 %v208, 0.0
        %v210 = vmin.f32 %v209, 1.0
        %v211 = vstv %s207
        %v212 = vmul.f32 %v211, %v210
        %v213 = vadd.f32 %v205, %v212
        %s214 = sadd.s32 %s188, 4
        %s215 = sld [smem:[#allocation2 + %s214]]
        %v216 = vsub.f32 %v187, 3.0
        %v217 = vmax.f32 %v216, 0.0
        %v218 = vmin.f32 %v217, 1.0
        %v219 = vstv %s215
        %v220 = vmul.f32 %v219, %v218
        %v221 = vadd.f32 %v213, %v220
        %s222 = sadd.s32 %s188, 5
        %s223 = sld [smem:[#allocation2 + %s222]]
        %v224 = vsub.f32 %v187, 4.0
        %v225 = vmax.f32 %v224, 0.0
        %v226 = vmin.f32 %v225, 1.0
        %v227 = vstv %s223
        %v228 = vmul.f32 %v227, %v226
        %v229 = vadd.f32 %v221, %v228
        %s230 = sadd.s32 %s188, 6
        %s231 = sld [smem:[#allocation2 + %s230]]
        %v232 = vsub.f32 %v187, 5.0
        %v233 = vmax.f32 %v232, 0.0
        %v234 = vmin.f32 %v233, 1.0
        %v235 = vstv %s231
        %v236 = vmul.f32 %v235, %v234
        %v237 = vadd.f32 %v229, %v236
        %s238 = sadd.s32 %s188, 7
        %s239 = sld [smem:[#allocation2 + %s238]]
        %v240 = vsub.f32 %v187, 6.0
        %v241 = vmax.f32 %v240, 0.0
        %v242 = vmin.f32 %v241, 1.0
        %v243 = vstv %s239
        %v244 = vmul.f32 %v243, %v242
        %v245 = vadd.f32 %v237, %v244
        %s246 = sadd.s32 %s188, 8
        %s247 = sld [smem:[#allocation2 + %s246]]
        %v248 = vsub.f32 %v187, 7.0
        %v249 = vmax.f32 %v248, 0.0
        %v250 = vmin.f32 %v249, 1.0
        %v251 = vstv %s247
        %v252 = vmul.f32 %v251, %v250
        %v253 = vadd.f32 %v245, %v252
        %s254 = sadd.s32 %s188, 9
        %s255 = sld [smem:[#allocation2 + %s254]]
        %v256 = vsub.f32 %v187, 8.0
        %v257 = vmax.f32 %v256, 0.0
        %v258 = vmin.f32 %v257, 1.0
        %v259 = vstv %s255
        %v260 = vmul.f32 %v259, %v258
        %v261 = vadd.f32 %v253, %v260
        %s262 = sadd.s32 %s188, 10
        %s263 = sld [smem:[#allocation2 + %s262]]
        %v264 = vsub.f32 %v187, 9.0
        %v265 = vmax.f32 %v264, 0.0
        %v266 = vmin.f32 %v265, 1.0
        %v267 = vstv %s263
        %v268 = vmul.f32 %v267, %v266
        %v269 = vadd.f32 %v261, %v268
        %v270 = vmul.f32 %v186, %v269
        %v271 = vmax.f32 %v270, 0.0
        %v272 = vmin.f32 %v271, 1.0
        %273 = vst [vmem:[%s183] sm:$0x3] %v272
        %p274 = scmp.lt.s32.totalorder %s18, 5
        %s275 = scalar_select %p274, %s18, 5
        %p276 = scmp.lt.s32.totalorder %s19, 0
        %s277 = scalar_select %p276, %s19, 0
        %s278 = sadd.s32 %s277, %s275
        %s279 = smul.addr %s278, 2
        %s280 = scalar_lea.vmem %s2, %s279
        // Predicated region
        $region33: #{curl_transformer_forward.3} parent=27 // pred_check
          %p281 = pneg %p95
        $region34: #{curl_transformer_forward.3} parent=27 // pred_check_branch
          %283 = sbr.rel (%p281) target = $region36
        $region35: #{curl_transformer_forward.3} parent=27 // pred_region
          _
        $region36: #{curl_transformer_forward.3} parent=27 // pred_fallthru
          _
      $region28: #{curl_transformer_forward.3} parent=5 // pred_fallthru
        _
      %p284 = scmp.le.s32.totalorder 2, %s9
      // Predicated region
      $region37: #{curl_transformer_forward.3} parent=5 // pred_check
        %p285 = pneg %p284
      $region38: #{curl_transformer_forward.3} parent=5 // pred_check_branch
        %287 = sbr.rel (%p285) target = $region40
      $region39: #{curl_transformer_forward.3} parent=5 // pred_region
        %s288 = ssub.s32 %s9, 2
        // Predicated region
        $region41: #{curl_transformer_forward.3} parent=39 // pred_check
          %p289 = pneg %p101
        $region42: #{curl_transformer_forward.3} parent=39 // pred_check_branch
          %291 = sbr.rel (%p289) target = $region44
        $region43: #{curl_transformer_forward.3} parent=39 // pred_region
          %p292 = scmp.lt.s32.totalorder %s20, 5
          %s293 = scalar_select %p292, %s20, 5
          %p294 = scmp.lt.s32.totalorder %s21, 0
          %s295 = scalar_select %p294, %s21, 0
          %s296 = sadd.s32 %s295, %s293
          %s297 = smul.addr %s296, 2
          %s298 = scalar_lea.vmem %s2, %s297
        $region44: #{curl_transformer_forward.3} parent=39 // pred_fallthru
          _
      $region40: #{curl_transformer_forward.3} parent=5 // pred_fallthru
        _
    $region6: #{curl_transformer_forward.3} parent=1 // loop_footer
      %s13 = sadd.s32 1, %s9
    $region7: #{curl_transformer_forward.3} parent=1 // loop_footer_branch
      %8 = sbr.rel target = $region3
    $region8: #{curl_transformer_forward.3} parent=1 // loop_exit
      _
    %299 = vsyncpa [#allocation3], 1
    %s300 = scalar_lea.sflag [#allocation3], 1
    %301 = vsyncpa %s300, 1

// kernel: curl_transformer_forward.2
$region0: #{curl_transformer_forward.2}
  #allocation0 [shape = 'u32[]', space=smem, size = 0x4, offset = 0x4, fixed_abs, tag = 'smem constant byte address 0x4 - core index']
  #allocation1 [shape = 'u32[144,128]{1,0:T(1,128)}', space=vmem, size = 0x12000, scoped, tag = 'internal scratch']
  %s0 = inlined_call_operand.vmem [shape: f32[2,3,256], index: 0, kind: input, shape index: {}]
  %s1 = inlined_call_operand.vmem [shape: f32[32,3], index: 1, kind: input, shape index: {}]
  %s2 = inlined_call_operand.vmem [shape: f32[32,1], index: 2, kind: input, shape index: {}]
  %s3 = inlined_call_operand.vmem [shape: bf16[64,32], index: 3, kind: input, shape index: {}]
  %s4 = inlined_call_operand.vmem [shape: f32[64,1], index: 4, kind: input, shape index: {}]
  %s5 = inlined_call_operand.vmem [shape: f32[2,1,64,1], index: 5, kind: output, shape index: {}]
  %s6 = sld [smem:[#allocation0]]
  $region53: #{curl_transformer_forward.2} parent=0
    _
  %s8 = ssub.s32 1, %s6
  %s9 = scalar_select 0, %s8, %s6
  loop: start=0, step=1, limit=4
  $region2: #{curl_transformer_forward.2} parent=0 // loop_pre_header
    _
  $region3: #{curl_transformer_forward.2} parent=0 // loop_header
    %s11 = sphi 0, %s15
    %p12 = scmp.ge.s32.totalorder %s11, 4
    %s18 = sphi 0, %s30
    %s19 = sphi 0, %s26
    %s20 = sphi 0, %s18
    %s21 = sphi 0, %s19
    %s22 = sphi 0, %s20
    %s23 = sphi 0, %s21
    %s35 = sphi 0, %s37
    %s38 = sphi 0, %s35
    %s39 = sphi 0, %s38
    %s55 = sphi 0, %s39
    %s59 = sphi 0, %s59
    %s61 = sphi 0, %s59
    %s62 = sphi 0, %s61
    %s76 = sphi 0, %s62
    %s80 = sphi 0, %s80
    %s82 = sphi 0, %s80
    %s83 = sphi 0, %s82
    %s97 = sphi 0, %s83
    %s101 = sphi 0, %s101
    %s103 = sphi 0, %s101
    %s104 = sphi 0, %s103
    %s118 = sphi 0, %s104
    %s122 = sphi 0, %s122
    %s124 = sphi 0, %s122
    %s125 = sphi 0, %s124
    %s139 = sphi 0, %s125
    %s147 = sphi 0, %s149
    %s150 = sphi 0, %s147
    %s151 = sphi 0, %s150
    %s167 = sphi 0, %s151
  $region4: #{curl_transformer_forward.2} parent=0 // loop_header_branch
    %14 = sbr.rel (%p12) target = $region8
  $region5: #{curl_transformer_forward.2} parent=0 // loop_body
    %s16 = ssub.s32 %s11, 1
    %s17 = ssub.s32 %s11, 2
    %s24 = sadd.s32 1, %s19
    %p25 = scmp.ge.s32.totalorder %s24, 1
    %s26 = scalar_select %p25, 0, %s24
    %s27 = sadd.s32 1, %s18
    %s28 = scalar_select %p25, %s27, %s18
    %p29 = scmp.ge.s32.totalorder %s28, 2
    %s30 = scalar_select %p29, 0, %s28
    %s31 = ssub.s32 %s18, %s30
    %s32 = ssub.s32 %s19, %s26
    %s33 = sor.u32 %s31, %s32
    %p34 = scmp.eq.s32.totalorder %s33, 0
    %s36 = sadd.s32 %s35, 1
    %s37 = scalar_select %p34, %s35, %s36
    %p40 = pneg %p34
    %p41 = scmp.eq.s32.totalorder %s11, 1
    %p42 = por %p40, %p41
    %p43 = scmp.ne.s32.totalorder %s35, %s38
    %p44 = scmp.eq.s32.totalorder %s11, 0
    %p45 = por %p43, %p44
    %p46 = scmp.ne.s32.totalorder %s35, %s38
    %p47 = scmp.eq.s32.totalorder %s16, 1
    %p48 = por %p46, %p47
    %p49 = scmp.ne.s32.totalorder %s38, %s39
    %p50 = scmp.eq.s32.totalorder %s16, 0
    %p51 = por %p49, %p50
    %p52 = scmp.ne.s32.totalorder %s38, %s39
    %p53 = scmp.eq.s32.totalorder %s17, 1
    %p54 = por %p52, %p53
    %p56 = scmp.ne.s32.totalorder %s39, %s55
    %p57 = scmp.eq.s32.totalorder %s17, 0
    %p58 = por %p56, %p57
    %s60 = sadd.s32 %s59, 1
    %p63 = scmp.eq.s32.totalorder %s11, 1
    %p64 = scmp.ne.s32.totalorder %s59, %s61
    %p65 = scmp.eq.s32.totalorder %s11, 0
    %p66 = por %p64, %p65
    %p67 = scmp.ne.s32.totalorder %s59, %s61
    %p68 = scmp.eq.s32.totalorder %s16, 1
    %p69 = por %p67, %p68
    %p70 = scmp.ne.s32.totalorder %s61, %s62
    %p71 = scmp.eq.s32.totalorder %s16, 0
    %p72 = por %p70, %p71
    %p73 = scmp.ne.s32.totalorder %s61, %s62
    %p74 = scmp.eq.s32.totalorder %s17, 1
    %p75 = por %p73, %p74
    %p77 = scmp.ne.s32.totalorder %s62, %s76
    %p78 = scmp.eq.s32.totalorder %s17, 0
    %p79 = por %p77, %p78
    %s81 = sadd.s32 %s80, 1
    %p84 = scmp.eq.s32.totalorder %s11, 1
    %p85 = scmp.ne.s32.totalorder %s80, %s82
    %p86 = scmp.eq.s32.totalorder %s11, 0
    %p87 = por %p85, %p86
    %p88 = scmp.ne.s32.totalorder %s80, %s82
    %p89 = scmp.eq.s32.totalorder %s16, 1
    %p90 = por %p88, %p89
    %p91 = scmp.ne.s32.totalorder %s82, %s83
    %p92 = scmp.eq.s32.totalorder %s16, 0
    %p93 = por %p91, %p92
    %p94 = scmp.ne.s32.totalorder %s82, %s83
    %p95 = scmp.eq.s32.totalorder %s17, 1
    %p96 = por %p94, %p95
    %p98 = scmp.ne.s32.totalorder %s83, %s97
    %p99 = scmp.eq.s32.totalorder %s17, 0
    %p100 = por %p98, %p99
    %s102 = sadd.s32 %s101, 1
    %p105 = scmp.eq.s32.totalorder %s11, 1
    %p106 = scmp.ne.s32.totalorder %s101, %s103
    %p107 = scmp.eq.s32.totalorder %s11, 0
    %p108 = por %p106, %p107
    %p109 = scmp.ne.s32.totalorder %s101, %s103
    %p110 = scmp.eq.s32.totalorder %s16, 1
    %p111 = por %p109, %p110
    %p112 = scmp.ne.s32.totalorder %s103, %s104
    %p113 = scmp.eq.s32.totalorder %s16, 0
    %p114 = por %p112, %p113
    %p115 = scmp.ne.s32.totalorder %s103, %s104
    %p116 = scmp.eq.s32.totalorder %s17, 1
    %p117 = por %p115, %p116
    %p119 = scmp.ne.s32.totalorder %s104, %s118
    %p120 = scmp.eq.s32.totalorder %s17, 0
    %p121 = por %p119, %p120
    %s123 = sadd.s32 %s122, 1
    %p126 = scmp.eq.s32.totalorder %s11, 1
    %p127 = scmp.ne.s32.totalorder %s122, %s124
    %p128 = scmp.eq.s32.totalorder %s11, 0
    %p129 = por %p127, %p128
    %p130 = scmp.ne.s32.totalorder %s122, %s124
    %p131 = scmp.eq.s32.totalorder %s16, 1
    %p132 = por %p130, %p131
    %p133 = scmp.ne.s32.totalorder %s124, %s125
    %p134 = scmp.eq.s32.totalorder %s16, 0
    %p135 = por %p133, %p134
    %p136 = scmp.ne.s32.totalorder %s124, %s125
    %p137 = scmp.eq.s32.totalorder %s17, 1
    %p138 = por %p136, %p137
    %p140 = scmp.ne.s32.totalorder %s125, %s139
    %p141 = scmp.eq.s32.totalorder %s17, 0
    %p142 = por %p140, %p141
    %s143 = ssub.s32 %s18, %s30
    %s144 = ssub.s32 %s19, %s26
    %s145 = sor.u32 %s143, %s144
    %p146 = scmp.eq.s32.totalorder %s145, 0
    %s148 = sadd.s32 %s147, 1
    %s149 = scalar_select %p146, %s147, %s148
    %p152 = pneg %p146
    %p153 = scmp.eq.s32.totalorder %s11, 1
    %p154 = por %p152, %p153
    %p155 = scmp.ne.s32.totalorder %s147, %s150
    %p156 = scmp.eq.s32.totalorder %s11, 0
    %p157 = por %p155, %p156
    %p158 = scmp.ne.s32.totalorder %s147, %s150
    %p159 = scmp.eq.s32.totalorder %s16, 1
    %p160 = por %p158, %p159
    %p161 = scmp.ne.s32.totalorder %s150, %s151
    %p162 = scmp.eq.s32.totalorder %s16, 0
    %p163 = por %p161, %p162
    %p164 = scmp.ne.s32.totalorder %s150, %s151
    %p165 = scmp.eq.s32.totalorder %s17, 1
    %p166 = por %p164, %p165
    %p168 = scmp.ne.s32.totalorder %s151, %s167
    %p169 = scmp.eq.s32.totalorder %s17, 0
    %p170 = por %p168, %p169
    %p171 = scmp.le.s32.totalorder 1, %s11
    %p172 = scmp.lt.s32.totalorder %s11, 3
    %p173 = pnand %p171, %p172
    %p174 = pneg %p173
    // Predicated region
    $region9: #{curl_transformer_forward.2} parent=5 // pred_check
      _
    $region10: #{curl_transformer_forward.2} parent=5 // pred_check_branch
      %176 = sbr.rel (%p173) target = $region12
    $region11: #{curl_transformer_forward.2} parent=5 // pred_region
      %s177 = ssub.s32 %s11, 1
      // Predicated region
      $region13: #{curl_transformer_forward.2} parent=11 // pred_check
        %p178 = pneg %p72
      $region14: #{curl_transformer_forward.2} parent=11 // pred_check_branch
        %180 = sbr.rel (%p178) target = $region16
      $region15: #{curl_transformer_forward.2} parent=11 // pred_region
        _
      $region16: #{curl_transformer_forward.2} parent=11 // pred_fallthru
        _
      // Predicated region
      $region17: #{curl_transformer_forward.2} parent=11 // pred_check
        %p181 = pneg %p93
      $region18: #{curl_transformer_forward.2} parent=11 // pred_check_branch
        %183 = sbr.rel (%p181) target = $region20
      $region19: #{curl_transformer_forward.2} parent=11 // pred_region
        _
      $region20: #{curl_transformer_forward.2} parent=11 // pred_fallthru
        _
      // Predicated region
      $region21: #{curl_transformer_forward.2} parent=11 // pred_check
        %p184 = pneg %p114
      $region22: #{curl_transformer_forward.2} parent=11 // pred_check_branch
        %186 = sbr.rel (%p184) target = $region24
      $region23: #{curl_transformer_forward.2} parent=11 // pred_region
        _
      $region24: #{curl_transformer_forward.2} parent=11 // pred_fallthru
        _
      // Predicated region
      $region25: #{curl_transformer_forward.2} parent=11 // pred_check
        %p187 = pneg %p135
      $region26: #{curl_transformer_forward.2} parent=11 // pred_check_branch
        %189 = sbr.rel (%p187) target = $region28
      $region27: #{curl_transformer_forward.2} parent=11 // pred_region
        _
      $region28: #{curl_transformer_forward.2} parent=11 // pred_fallthru
        _
    $region12: #{curl_transformer_forward.2} parent=5 // pred_fallthru
      _
    %p190 = scmp.lt.s32.totalorder %s11, 2
    // Predicated region
    $region29: #{curl_transformer_forward.2} parent=5 // pred_check
      %p191 = pneg %p190
    $region30: #{curl_transformer_forward.2} parent=5 // pred_check_branch
      %193 = sbr.rel (%p191) target = $region32
    $region31: #{curl_transformer_forward.2} parent=5 // pred_region
      // Predicated region
      $region33: #{curl_transformer_forward.2} parent=31 // pred_check
        %p194 = pneg %p45
      $region34: #{curl_transformer_forward.2} parent=31 // pred_check_branch
        %196 = sbr.rel (%p194) target = $region36
      $region35: #{curl_transformer_forward.2} parent=31 // pred_region
        %s197 = smul.u32 2, %s19
        %p198 = scmp.lt.s32.totalorder %s18, 1
        %s199 = scalar_select %p198, %s18, 1
        %p200 = scmp.lt.s32.totalorder %s197, 1
        %s201 = scalar_select %p200, %s197, 1
        %s202 = smul.addr %s199, 2
        %s203 = sadd.s32 %s201, %s202
        %s204 = smul.addr %s203, 4
        %s205 = scalar_lea.vmem %s0, %s204
        %s206 = smul.u32 2, %s19
      $region36: #{curl_transformer_forward.2} parent=31 // pred_fallthru
        _
    $region32: #{curl_transformer_forward.2} parent=5 // pred_fallthru
      _
    %p207 = scmp.le.s32.totalorder 1, %s11
    %p208 = scmp.lt.s32.totalorder %s11, 3
    %p209 = pnand %p207, %p208
    %p210 = pneg %p209
    // Predicated region
    $region37: #{curl_transformer_forward.2} parent=5 // pred_check
      _
    $region38: #{curl_transformer_forward.2} parent=5 // pred_check_branch
      %212 = sbr.rel (%p209) target = $region40
    $region39: #{curl_transformer_forward.2} parent=5 // pred_region
      %s213 = ssub.s32 %s11, 1
      %s214 = smul.u32 2, %s21
      %p215 = scmp.lt.s32.totalorder %s20, 1
      %s216 = scalar_select %p215, %s20, 1
      %p217 = scmp.lt.s32.totalorder %s214, 1
      %s218 = scalar_select %p217, %s214, 1
      %s219 = smul.addr %s216, 2
      %s220 = sadd.s32 %s218, %s219
      %s221 = smul.addr %s220, 4
      %s222 = scalar_lea.vmem %s0, %s221
      %p223 = pneg %p51
      %p224 = pneg %p48
      %p225 = pneg %p72
      %p226 = pneg %p69
      %p227 = pneg %p93
      %p228 = pneg %p90
      %p229 = pneg %p114
      %p230 = pneg %p111
      %p231 = pneg %p135
      %p232 = pneg %p132
      %p233 = pneg %p163
      %p234 = pneg %p160
      %p235 = scmp.lt.s32.totalorder %s20, 1
      %s236 = scalar_select %p235, %s20, 1
      %p237 = scmp.lt.s32.totalorder %s21, 0
      %s238 = scalar_select %p237, %s21, 0
      %s239 = smul.addr %s238, 8
      %s240 = smul.addr %s236, 8
      %s241 = sadd.s32 %s239, %s240
      %s242 = smul.addr %s241, 8
      %s243 = scalar_lea.vmem %s5, %s242
      %s244 = smul.u32 2, %s21
      %p245 = scmp.lt.s32.totalorder %s20, 1
      %s246 = scalar_select %p245, %s20, 1
      %p247 = scmp.lt.s32.totalorder %s244, 1
      %s248 = scalar_select %p247, %s244, 1
      %s249 = smul.addr %s246, 2
      %s250 = sadd.s32 %s248, %s249
      %s251 = smul.addr %s250, 4
      %s252 = scalar_lea.vmem %s0, %s251
      %s253 = smul.u32 2, %s21
      %p254 = scmp.lt.s32.totalorder %s20, 1
      %s255 = scalar_select %p254, %s20, 1
      %p256 = scmp.lt.s32.totalorder %s21, 0
      %s257 = scalar_select %p256, %s21, 0
      %s258 = smul.addr %s257, 8
      %s259 = smul.addr %s255, 8
      %s260 = sadd.s32 %s258, %s259
      %s261 = smul.addr %s260, 8
      %s262 = scalar_lea.vmem %s5, %s261
      %v264 = vld [vmem:[%s252] sm:$0x77]
      %v265 = vld [vmem:[%s1] sm:$0xff]
      %v266 = vld [vmem:[%s1 + $0x8] sm:$0xff]
      %v267 = vld [vmem:[%s1 + $0x10] sm:$0xff]
      %v268 = vld [vmem:[%s1 + $0x18] sm:$0xff]
      %270 = vset.pattern.permute.xlu0 0
      %271 = vperm.xlu0 %270, %v265
      %v272 = vpop.permute.xlu0 %271
      %275 = vset.pattern.permute.xlu0 0
      %276 = vperm.xlu0 %275, %v266
      %v277 = vpop.permute.xlu0 %276
      %280 = vset.pattern.permute.xlu0 0
      %281 = vperm.xlu0 %280, %v267
      %v282 = vpop.permute.xlu0 %281
      %285 = vset.pattern.permute.xlu0 0
      %286 = vperm.xlu0 %285, %v268
      %v287 = vpop.permute.xlu0 %286
      %v290 = vlaneseq
      %v291 = vshrl.u32 %v290, 7
      %v292 = vsub.s32 0, %v291
      %v293 = vrot.slane %v264, %v292
      %v294 = vlaneseq
      %v295 = vshrl.u32 %v294, 7
      %v296 = vsub.s32 4, %v295
      %v297 = vrot.slane %v264, %v296
      %v300 = vlaneseq
      %v301 = vshrl.u32 %v300, 7
      %v302 = vsub.s32 0, %v301
      %v303 = vrot.slane %v293, %v302
      %v304 = vlaneseq
      %v305 = vshrl.u32 %v304, 7
      %v306 = vsub.s32 0, %v305
      %v307 = vrot.slane %v297, %v306
      %v308 = vmul.f32 %v272, %v303
      %v309 = vmul.f32 %v272, %v307
      %v310 = vmul.f32 %v277, %v303
      %v311 = vmul.f32 %v277, %v307
      %v312 = vmul.f32 %v282, %v303
      %v313 = vmul.f32 %v282, %v307
      %v314 = vmul.f32 %v287, %v303
      %v315 = vmul.f32 %v287, %v307
      %316 = vset.pattern.permute.xlu0 1
      %317 = vperm.xlu0 %316, %v265
      %v318 = vpop.permute.xlu0 %317
      %320 = vset.pattern.permute.xlu0 1
      %321 = vperm.xlu0 %320, %v266
      %v322 = vpop.permute.xlu0 %321
      %324 = vset.pattern.permute.xlu0 1
      %325 = vperm.xlu0 %324, %v267
      %v326 = vpop.permute.xlu0 %325
      %328 = vset.pattern.permute.xlu0 1
      %329 = vperm.xlu0 %328, %v268
      %v330 = vpop.permute.xlu0 %329
      %v332 = vlaneseq
      %v333 = vshrl.u32 %v332, 7
      %v334 = vsub.s32 1, %v333
      %v335 = vrot.slane %v264, %v334
      %v336 = vlaneseq
      %v337 = vshrl.u32 %v336, 7
      %v338 = vsub.s32 5, %v337
      %v339 = vrot.slane %v264, %v338
      %v342 = vlaneseq
      %v343 = vshrl.u32 %v342, 7
      %v344 = vsub.s32 1, %v343
      %v345 = vrot.slane %v335, %v344
      %v346 = vlaneseq
      %v347 = vshrl.u32 %v346, 7
      %v348 = vsub.s32 1, %v347
      %v349 = vrot.slane %v339, %v348
      %v350 = vmul.f32 %v318, %v345
      %v351 = vmul.f32 %v318, %v349
      %v352 = vmul.f32 %v322, %v345
      %v353 = vmul.f32 %v322, %v349
      %v354 = vmul.f32 %v326, %v345
      %v355 = vmul.f32 %v326, %v349
      %v356 = vmul.f32 %v330, %v345
      %v357 = vmul.f32 %v330, %v349
      %v358 = vadd.f32 %v308, %v350
      %v359 = vadd.f32 %v309, %v351
      %v360 = vadd.f32 %v310, %v352
      %v361 = vadd.f32 %v311, %v353
      %v362 = vadd.f32 %v312, %v354
      %v363 = vadd.f32 %v313, %v355
      %v364 = vadd.f32 %v314, %v356
      %v365 = vadd.f32 %v315, %v357
      %366 = vset.pattern.permute.xlu0 2
      %367 = vperm.xlu0 %366, %v265
      %v368 = vpop.permute.xlu0 %367
      %370 = vset.pattern.permute.xlu0 2
      %371 = vperm.xlu0 %370, %v266
      %v372 = vpop.permute.xlu0 %371
      %374 = vset.pattern.permute.xlu0 2
      %375 = vperm.xlu0 %374, %v267
      %v376 = vpop.permute.xlu0 %375
      %378 = vset.pattern.permute.xlu0 2
      %379 = vperm.xlu0 %378, %v268
      %v380 = vpop.permute.xlu0 %379
      %v382 = vlaneseq
      %v383 = vshrl.u32 %v382, 7
      %v384 = vsub.s32 2, %v383
      %v385 = vrot.slane %v264, %v384
      %v386 = vlaneseq
      %v387 = vshrl.u32 %v386, 7
      %v388 = vsub.s32 6, %v387
      %v389 = vrot.slane %v264, %v388
      %v392 = vlaneseq
      %v393 = vshrl.u32 %v392, 7
      %v394 = vsub.s32 2, %v393
      %v395 = vrot.slane %v385, %v394
      %v396 = vlaneseq
      %v397 = vshrl.u32 %v396, 7
      %v398 = vsub.s32 2, %v397
      %v399 = vrot.slane %v389, %v398
      %v400 = vmul.f32 %v368, %v395
      %v401 = vmul.f32 %v368, %v399
      %v402 = vmul.f32 %v372, %v395
      %v403 = vmul.f32 %v372, %v399
      %v404 = vmul.f32 %v376, %v395
      %v405 = vmul.f32 %v376, %v399
      %v406 = vmul.f32 %v380, %v395
      %v407 = vmul.f32 %v380, %v399
      %v408 = vadd.f32 %v358, %v400
      %v409 = vadd.f32 %v359, %v401
      %v410 = vadd.f32 %v360, %v402
      %v411 = vadd.f32 %v361, %v403
      %v412 = vadd.f32 %v362, %v404
      %v413 = vadd.f32 %v363, %v405
      %v414 = vadd.f32 %v364, %v406
      %v415 = vadd.f32 %v365, %v407
      %v416 = vld [vmem:[%s2] sm:$0xff]
      %v417 = vld [vmem:[%s2 + $0x8] sm:$0xff]
      %v418 = vld [vmem:[%s2 + $0x10] sm:$0xff]
      %v419 = vld [vmem:[%s2 + $0x18] sm:$0xff]
      %421 = vset.pattern.permute.xlu0 0
      %422 = vperm.xlu0 %421, %v416
      %v423 = vpop.permute.xlu0 %422
      %426 = vset.pattern.permute.xlu0 0
      %427 = vperm.xlu0 %426, %v417
      %v428 = vpop.permute.xlu0 %427
      %431 = vset.pattern.permute.xlu0 0
      %432 = vperm.xlu0 %431, %v418
      %v433 = vpop.permute.xlu0 %432
      %436 = vset.pattern.permute.xlu0 0
      %437 = vperm.xlu0 %436, %v419
      %v438 = vpop.permute.xlu0 %437
      %v440 = vadd.f32 %v408, %v423
      %v441 = vadd.f32 %v409, %v423
      %v442 = vadd.f32 %v410, %v428
      %v443 = vadd.f32 %v411, %v428
      %v444 = vadd.f32 %v412, %v433
      %v445 = vadd.f32 %v413, %v433
      %v446 = vadd.f32 %v414, %v438
      %v447 = vadd.f32 %v415, %v438
      %v448 = vmax.f32 %v440, 0.0
      %v449 = vmax.f32 %v441, 0.0
      %v450 = vmax.f32 %v442, 0.0
      %v451 = vmax.f32 %v443, 0.0
      %v452 = vmax.f32 %v444, 0.0
      %v453 = vmax.f32 %v445, 0.0
      %v454 = vmax.f32 %v446, 0.0
      %v455 = vmax.f32 %v447, 0.0
      %v456 = vld [vmem:[%s3] sm:$0xf]
      %v457 = vld [vmem:[%s3 + $0x4] sm:$0xf]
      %v458 = vld [vmem:[%s3 + $0x8] sm:$0xf]
      %v459 = vld [vmem:[%s3 + $0xc] sm:$0xf]
      %v460 = vld [vmem:[%s3 + $0x10] sm:$0xf]
      %v461 = vld [vmem:[%s3 + $0x14] sm:$0xf]
      %v462 = vld [vmem:[%s3 + $0x18] sm:$0xf]
      %v463 = vld [vmem:[%s3 + $0x1c] sm:$0xf]
      %v464 = vpack.c.bf16 %v450, %v448
      %v465 = vpack.c.bf16 %v451, %v449
      %v466 = vpack.c.bf16 %v454, %v452
      %v467 = vpack.c.bf16 %v455, %v453
      %v468 = vld [vmem:[%s4] sm:$0xff]
      %v469 = vld [vmem:[%s4 + $0x8] sm:$0xff]
      %v470 = vld [vmem:[%s4 + $0x10] sm:$0xff]
      %v471 = vld [vmem:[%s4 + $0x18] sm:$0xff]
      %v472 = vld [vmem:[%s4 + $0x20] sm:$0xff]
      %v473 = vld [vmem:[%s4 + $0x28] sm:$0xff]
      %v474 = vld [vmem:[%s4 + $0x30] sm:$0xff]
      %v475 = vld [vmem:[%s4 + $0x38] sm:$0xff]
      %477 = vset.pattern.permute.xlu0 0
      %478 = vperm.xlu0 %477, %v468
      %v479 = vpop.permute.xlu0 %478
      %482 = vset.pattern.permute.xlu0 0
      %483 = vperm.xlu0 %482, %v469
      %v484 = vpop.permute.xlu0 %483
      %487 = vset.pattern.permute.xlu0 0
      %488 = vperm.xlu0 %487, %v470
      %v489 = vpop.permute.xlu0 %488
      %492 = vset.pattern.permute.xlu0 0
      %493 = vperm.xlu0 %492, %v471
      %v494 = vpop.permute.xlu0 %493
      %497 = vset.pattern.permute.xlu0 0
      %498 = vperm.xlu0 %497, %v472
      %v499 = vpop.permute.xlu0 %498
      %502 = vset.pattern.permute.xlu0 0
      %503 = vperm.xlu0 %502, %v473
      %v504 = vpop.permute.xlu0 %503
      %507 = vset.pattern.permute.xlu0 0
      %508 = vperm.xlu0 %507, %v474
      %v509 = vpop.permute.xlu0 %508
      %512 = vset.pattern.permute.xlu0 0
      %513 = vperm.xlu0 %512, %v475
      %v514 = vpop.permute.xlu0 %513
      %v524 = vunpack.c.l.b16 %v456
      %v525 = vunpack.c.l.b16 %v457
      %v526 = vunpack.c.l.b16 %v458
      %v527 = vunpack.c.l.b16 %v459
      %v528 = vunpack.c.l.b16 %v460
      %v529 = vunpack.c.l.b16 %v461
      %v530 = vunpack.c.l.b16 %v462
      %v531 = vunpack.c.l.b16 %v463
      %v532 = vpack.c.b16 %v525, %v524
      %v533 = vpack.c.b16 %v527, %v526
      %v534 = vpack.c.b16 %v529, %v528
      %v535 = vpack.c.b16 %v531, %v530
      %vm536 = vcmask 261120
      %v538 = vsel %vm536, %v532, 0
      %v541 = vsel %vm536, %v533, 0
      %v544 = vsel %vm536, %v534, 0
      %v547 = vsel %vm536, %v535, 0
      %549 = vmatprep.subr.bf16.mxu0 %v465
      %550 = vmatpush1.bf16.msra.mxu0 %v464
      %551 = vmatprep.subr.bf16.mxu0 %v467
      %552 = vmatpush1.bf16.msra.mxu0 %v466
      %553 = vmatprep.subr.bf16.mxu0 0
      %554 = vmatpush1.bf16.msra.mxu0 0
      %555 = vmatprep.subr.bf16.mxu0 0
      %556 = vmatpush1.bf16.msra.mxu0 0
      %557 = vmatprep.subr.bf16.mxu0 0
      %558 = vmatpush1.bf16.msra.mxu0 0
      %559 = vmatprep.subr.bf16.mxu0 0
      %560 = vmatpush1.bf16.msra.mxu0 0
      %561 = vmatprep.subr.bf16.mxu0 0
      %562 = vmatpush1.bf16.msra.mxu0 0
      %563 = vmatprep.subr.bf16.mxu0 0
      %564 = vmatpush1.bf16.msra.mxu0 0
      %565 = vmatprep.subr.bf16.mxu0 0
      %566 = vmatpush1.bf16.msra.mxu0 0
      %567 = vmatprep.subr.bf16.mxu0 0
      %568 = vmatpush1.bf16.msra.mxu0 0
      %569 = vmatprep.subr.bf16.mxu0 0
      %570 = vmatpush1.bf16.msra.mxu0 0
      %571 = vmatprep.subr.bf16.mxu0 0
      %572 = vmatpush1.bf16.msra.mxu0 0
      %573 = vmatprep.subr.bf16.mxu0 0
      %574 = vmatpush1.bf16.msra.mxu0 0
      %575 = vmatprep.subr.bf16.mxu0 0
      %576 = vmatpush1.bf16.msra.mxu0 0
      %577 = vmatprep.subr.bf16.mxu0 0
      %578 = vmatpush1.bf16.msra.mxu0 0
      %579 = vmatprep.subr.bf16.mxu0 0
      %580 = vmatpush1.bf16.msra.mxu0 0
      %581 = vmatprep.mubr.bf16.mxu0 0
      %582 = vmatmul.mubr.bf16.gmra.mrb[0].mxu0 %v538
      %v583 = vpop.f32.mrb[0].mxu0
      %v584 = vadd.f32 %v479, %v583
      %v585 = vpop.f32.mrb[0].mxu0
      %v586 = vadd.f32 %v479, %v585
      %v587 = vpop.f32.mrb[0].mxu0
      %v588 = vadd.f32 %v484, %v587
      %v589 = vpop.f32.mrb[0].mxu0
      %v590 = vadd.f32 %v484, %v589
      %591 = vmatprep.mubr.bf16.mxu0 0
      %592 = vmatmul.mubr.bf16.gmra.mrb[0].mxu0 %v541
      %v593 = vpop.f32.mrb[0].mxu0
      %v594 = vadd.f32 %v489, %v593
      %v595 = vpop.f32.mrb[0].mxu0
      %v596 = vadd.f32 %v489, %v595
      %v597 = vpop.f32.mrb[0].mxu0
      %v598 = vadd.f32 %v494, %v597
      %v599 = vpop.f32.mrb[0].mxu0
      %v600 = vadd.f32 %v494, %v599
      %601 = vmatprep.mubr.bf16.mxu0 0
      %602 = vmatmul.mubr.bf16.gmra.mrb[0].mxu0 %v544
      %v603 = vpop.f32.mrb[0].mxu0
      %v604 = vadd.f32 %v499, %v603
      %v605 = vpop.f32.mrb[0].mxu0
      %v606 = vadd.f32 %v499, %v605
      %v607 = vpop.f32.mrb[0].mxu0
      %v608 = vadd.f32 %v504, %v607
      %v609 = vpop.f32.mrb[0].mxu0
      %v610 = vadd.f32 %v504, %v609
      %611 = vmatprep.mubr.bf16.mxu0 0
      %612 = vmatmul.mubr.bf16.gmra.mrb[0].mxu0 %v547
      %v613 = vpop.f32.mrb[0].mxu0
      %v614 = vadd.f32 %v509, %v613
      %v615 = vpop.f32.mrb[0].mxu0
      %v616 = vadd.f32 %v509, %v615
      %v617 = vpop.f32.mrb[0].mxu0
      %v618 = vadd.f32 %v514, %v617
      %v619 = vpop.f32.mrb[0].mxu0
      %v620 = vadd.f32 %v514, %v619
      %621 = vdwg.mxu0
      %v622 = vmax.f32 %v584, 0.0
      %v623 = vmax.f32 %v586, 0.0
      %v624 = vmax.f32 %v588, 0.0
      %v625 = vmax.f32 %v590, 0.0
      %v626 = vmax.f32 %v594, 0.0
      %v627 = vmax.f32 %v596, 0.0
      %v628 = vmax.f32 %v598, 0.0
      %v629 = vmax.f32 %v600, 0.0
      %v630 = vmax.f32 %v604, 0.0
      %v631 = vmax.f32 %v606, 0.0
      %v632 = vmax.f32 %v608, 0.0
      %v633 = vmax.f32 %v610, 0.0
      %v634 = vmax.f32 %v614, 0.0
      %v635 = vmax.f32 %v616, 0.0
      %v636 = vmax.f32 %v618, 0.0
      %v637 = vmax.f32 %v620, 0.0
      %v638 = vadd.f32 %v622, %v623
      %639 = vadd.xlane.f32.xlu0 %v638
      %v640 = vpop.xlane.xlu0 %639
      %v641 = vadd.f32 %v624, %v625
      %642 = vadd.xlane.f32.xlu0 %v641
      %v643 = vpop.xlane.xlu0 %642
      %v644 = vadd.f32 %v626, %v627
      %645 = vadd.xlane.f32.xlu0 %v644
      %v646 = vpop.xlane.xlu0 %645
      %v647 = vadd.f32 %v628, %v629
      %648 = vadd.xlane.f32.xlu0 %v647
      %v649 = vpop.xlane.xlu0 %648
      %v650 = vadd.f32 %v630, %v631
      %651 = vadd.xlane.f32.xlu0 %v650
      %v652 = vpop.xlane.xlu0 %651
      %v653 = vadd.f32 %v632, %v633
      %654 = vadd.xlane.f32.xlu0 %v653
      %v655 = vpop.xlane.xlu0 %654
      %v656 = vadd.f32 %v634, %v635
      %657 = vadd.xlane.f32.xlu0 %v656
      %v658 = vpop.xlane.xlu0 %657
      %v659 = vadd.f32 %v636, %v637
      %660 = vadd.xlane.f32.xlu0 %v659
      %v661 = vpop.xlane.xlu0 %660
      %vm662 = vcmask 7168
      %663 = vst.msk [vmem:[%s262] sm:$0xff] %vm662, %v640
      %664 = vst.msk [vmem:[%s262 + $0x8] sm:$0xff] %vm662, %v643
      %665 = vst.msk [vmem:[%s262 + $0x10] sm:$0xff] %vm662, %v646
      %666 = vst.msk [vmem:[%s262 + $0x18] sm:$0xff] %vm662, %v649
      %667 = vst.msk [vmem:[%s262 + $0x20] sm:$0xff] %vm662, %v652
      %668 = vst.msk [vmem:[%s262 + $0x28] sm:$0xff] %vm662, %v655
      %669 = vst.msk [vmem:[%s262 + $0x30] sm:$0xff] %vm662, %v658
      %670 = vst.msk [vmem:[%s262 + $0x38] sm:$0xff] %vm662, %v661
      %p671 = scmp.lt.s32.totalorder %s20, 1
      %s672 = scalar_select %p671, %s20, 1
      %p673 = scmp.lt.s32.totalorder %s21, 0
      %s674 = scalar_select %p673, %s21, 0
      %s675 = smul.addr %s674, 8
      %s676 = smul.addr %s672, 8
      %s677 = sadd.s32 %s675, %s676
      %s678 = smul.addr %s677, 8
      %s679 = scalar_lea.vmem %s5, %s678
      // Predicated region
      $region41: #{curl_transformer_forward.2} parent=39 // pred_check
        %p680 = pneg %p160
      $region42: #{curl_transformer_forward.2} parent=39 // pred_check_branch
        %682 = sbr.rel (%p680) target = $region44
      $region43: #{curl_transformer_forward.2} parent=39 // pred_region
        _
      $region44: #{curl_transformer_forward.2} parent=39 // pred_fallthru
        _
    $region40: #{curl_transformer_forward.2} parent=5 // pred_fallthru
      _
    %p683 = scmp.le.s32.totalorder 2, %s11
    // Predicated region
    $region45: #{curl_transformer_forward.2} parent=5 // pred_check
      %p684 = pneg %p683
    $region46: #{curl_transformer_forward.2} parent=5 // pred_check_branch
      %686 = sbr.rel (%p684) target = $region48
    $region47: #{curl_transformer_forward.2} parent=5 // pred_region
      %s687 = ssub.s32 %s11, 2
      // Predicated region
      $region49: #{curl_transformer_forward.2} parent=47 // pred_check
        %p688 = pneg %p166
      $region50: #{curl_transformer_forward.2} parent=47 // pred_check_branch
        %690 = sbr.rel (%p688) target = $region52
      $region51: #{curl_transformer_forward.2} parent=47 // pred_region
        %p691 = scmp.lt.s32.totalorder %s22, 1
        %s692 = scalar_select %p691, %s22, 1
        %p693 = scmp.lt.s32.totalorder %s23, 0
        %s694 = scalar_select %p693, %s23, 0
        %s695 = smul.addr %s694, 8
        %s696 = smul.addr %s692, 8
        %s697 = sadd.s32 %s695, %s696
        %s698 = smul.addr %s697, 8
        %s699 = scalar_lea.vmem %s5, %s698
      $region52: #{curl_transformer_forward.2} parent=47 // pred_fallthru
        _
    $region48: #{curl_transformer_forward.2} parent=5 // pred_fallthru
      _
  $region6: #{curl_transformer_forward.2} parent=0 // loop_footer
    %s15 = sadd.s32 1, %s11
  $region7: #{curl_transformer_forward.2} parent=0 // loop_footer_branch
    %10 = sbr.rel target = $region3
  $region8: #{curl_transformer_forward.2} parent=0 // loop_exit
    _

</llo_original>
